<compile_context>
chip_gen: v5e
topology: v5e:2x2
jax: 0.10.0
libtpu: 0.0.40
codegen_flags: <defaults>
</compile_context>

<pallas_src>
import jax
import jax.numpy as jnp
from jax.experimental import pallas as pl
from jax.experimental.pallas import tpu as pltpu

LANE = 128


def gcn_kernel(x_ref, adj_ref, w1_ref, w2_ref, out_ref):
    # All refs are lane-dense (last dim = 128) bf16 blocks fully resident in VMEM.
    x = x_ref[...]
    adj = adj_ref[...]

    # GraphConv 1, reassociated: (adj @ x) @ W1t   (== adj @ (x @ W1t))
    ax = jnp.dot(adj, x, preferred_element_type=jnp.float32)
    h = jnp.dot(ax.astype(jnp.bfloat16), w1_ref[...],
                preferred_element_type=jnp.float32)

    # ReLU on the VPU.
    # TODO(synk): nn.Dropout(0.5) is identity in eval mode; training-mode stochastic
    # masking (pltpu.prng_seed / prng_random_bits) intentionally not applied.
    h = jnp.maximum(h, 0.0).astype(jnp.bfloat16)

    # GraphConv 2: adj @ (h @ W2t)   (this order is already the cheaper one).
    hw = jnp.dot(h, w2_ref[...], preferred_element_type=jnp.float32)
    out = jnp.dot(adj, hw.astype(jnp.bfloat16), preferred_element_type=jnp.float32)

    # Lane-dense unmasked store (last dim padded to 128).
    out_ref[...] = out.astype(out_ref.dtype)


def _round_up(v, m):
    return pl.cdiv(v, m) * m


def gcn_forward(x, adj, w1t, w2t):
    """x: [N, nfeat] f32, adj: [N, N] f32, w1t: [nfeat, nhid], w2t: [nhid, nclass]."""
    n, nfeat = x.shape
    nhid = w1t.shape[1]
    nclass = w2t.shape[1]

    f_p = _round_up(nfeat, LANE)
    h_p = _round_up(nhid, LANE)
    c_p = _round_up(nclass, LANE)

    # Zero-pad lane dims to 128 and feed the MXU bf16 (f32 accumulation in-kernel).
    x_p = jnp.pad(x, ((0, 0), (0, f_p - nfeat))).astype(jnp.bfloat16)
    adj_b = adj.astype(jnp.bfloat16)
    w1_p = jnp.pad(w1t, ((0, f_p - nfeat), (0, h_p - nhid))).astype(jnp.bfloat16)
    w2_p = jnp.pad(w2t, ((0, h_p - nhid), (0, c_p - nclass))).astype(jnp.bfloat16)

    flops = 2 * n * n * f_p + 2 * n * f_p * h_p + 2 * n * h_p * c_p + 2 * n * n * c_p
    bytes_accessed = 2 * (x_p.size + adj_b.size + w1_p.size + w2_p.size) + 4 * n * c_p

    out_p = pl.pallas_call(
        gcn_kernel,
        out_shape=jax.ShapeDtypeStruct((n, c_p), jnp.float32),
        in_specs=[pl.BlockSpec(memory_space=pltpu.MemorySpace.VMEM)] * 4,
        out_specs=pl.BlockSpec(memory_space=pltpu.MemorySpace.VMEM),
        cost_estimate=pl.CostEstimate(
            flops=flops, transcendentals=0, bytes_accessed=bytes_accessed),
    )(x_p, adj_b, w1_p, w2_p)

    return out_p[:, :nclass]


def reference_forward(x, adj, w1t, w2t):
    h = adj @ (x @ w1t)
    h = jnp.maximum(h, 0.0)
    return adj @ (h @ w2t)


if __name__ == "__main__":
    N, NFEAT, NHID, NCLASS = 128, 32, 64, 8

    key = jax.random.PRNGKey(0)
    k_x, k_adj, k_w1, k_w2 = jax.random.split(key, 4)

    # Node features.
    x = jax.random.normal(k_x, (N, NFEAT), dtype=jnp.float32)

    # Symmetric, row-normalized dense adjacency with self-loops.
    a = (jax.random.uniform(k_adj, (N, N)) < 0.1).astype(jnp.float32)
    a = jnp.maximum(a, a.T) + jnp.eye(N, dtype=jnp.float32)
    deg = jnp.sum(a, axis=1, keepdims=True)
    adj = a / deg

    # Linear weights, PyTorch shape [out, in]; kernel consumes the transpose.
    b1 = 1.0 / jnp.sqrt(NFEAT)
    b2 = 1.0 / jnp.sqrt(NHID)
    w1 = jax.random.uniform(k_w1, (NHID, NFEAT), minval=-b1, maxval=b1)
    w2 = jax.random.uniform(k_w2, (NCLASS, NHID), minval=-b2, maxval=b2)
    w1t = w1.T.astype(jnp.float32)
    w2t = w2.T.astype(jnp.float32)

    out = gcn_forward(x, adj, w1t, w2t)
    out = jax.block_until_ready(out)

    ref = reference_forward(x, adj, w1t, w2t)
    assert out.shape == (N, NCLASS)
    # bf16 MXU operands (f32 accumulate) -> loosened tolerance vs. the f32 reference.
    assert jnp.allclose(out, ref, atol=2e-2, rtol=2e-2), float(
        jnp.max(jnp.abs(out - ref)))

    print("KERNEL_OK")
</pallas_src>

<mosaic_0001>
module attributes {stable_mosaic.version = 11 : i64} {
  func.func @gcn_kernel(%arg0: memref<128x128xbf16, #tpu.memory_space<vmem>>, %arg1: memref<128x128xbf16, #tpu.memory_space<vmem>>, %arg2: memref<128x128xbf16, #tpu.memory_space<vmem>>, %arg3: memref<128x128xbf16, #tpu.memory_space<vmem>>, %arg4: memref<128x128xf32, #tpu.memory_space<vmem>>) attributes {dimension_semantics = [], scalar_prefetch = 0 : i64, scratch_operands = 0 : i64, tpu.core_type = #tpu.core_type<tc>} {
    %c0 = arith.constant 0 : index
    %c0_0 = arith.constant 0 : index
    %0 = vector.load %arg0[%c0, %c0_0] : memref<128x128xbf16, #tpu.memory_space<vmem>>, vector<128x128xbf16>
    %c0_1 = arith.constant 0 : index
    %c0_2 = arith.constant 0 : index
    %1 = vector.load %arg1[%c0_1, %c0_2] : memref<128x128xbf16, #tpu.memory_space<vmem>>, vector<128x128xbf16>
    %cst = arith.constant dense<0.000000e+00> : vector<128x128xf32>
    %2 = tpu.matmul %1, %0, %cst {dimension_numbers = #tpu.dot_dimension_numbers<[1], [0], [0], [1], [0, 0, 1, 1], [], []>} : vector<128x128xbf16>, vector<128x128xbf16>, vector<128x128xf32> -> vector<128x128xf32>
    %3 = arith.truncf %2 : vector<128x128xf32> to vector<128x128xbf16>
    %c0_3 = arith.constant 0 : index
    %c0_4 = arith.constant 0 : index
    %4 = vector.load %arg2[%c0_3, %c0_4] : memref<128x128xbf16, #tpu.memory_space<vmem>>, vector<128x128xbf16>
    %cst_5 = arith.constant dense<0.000000e+00> : vector<128x128xf32>
    %5 = tpu.matmul %3, %4, %cst_5 {dimension_numbers = #tpu.dot_dimension_numbers<[1], [0], [0], [1], [0, 0, 1, 1], [], []>} : vector<128x128xbf16>, vector<128x128xbf16>, vector<128x128xf32> -> vector<128x128xf32>
    %cst_6 = arith.constant 0.000000e+00 : f32
    %6 = vector.broadcast %cst_6 : f32 to vector<128x128xf32>
    %7 = arith.maximumf %5, %6 : vector<128x128xf32>
    %8 = arith.truncf %7 : vector<128x128xf32> to vector<128x128xbf16>
    %c0_7 = arith.constant 0 : index
    %c0_8 = arith.constant 0 : index
    %9 = vector.load %arg3[%c0_7, %c0_8] : memref<128x128xbf16, #tpu.memory_space<vmem>>, vector<128x128xbf16>
    %cst_9 = arith.constant dense<0.000000e+00> : vector<128x128xf32>
    %10 = tpu.matmul %8, %9, %cst_9 {dimension_numbers = #tpu.dot_dimension_numbers<[1], [0], [0], [1], [0, 0, 1, 1], [], []>} : vector<128x128xbf16>, vector<128x128xbf16>, vector<128x128xf32> -> vector<128x128xf32>
    %11 = arith.truncf %10 : vector<128x128xf32> to vector<128x128xbf16>
    %cst_10 = arith.constant dense<0.000000e+00> : vector<128x128xf32>
    %12 = tpu.matmul %1, %11, %cst_10 {dimension_numbers = #tpu.dot_dimension_numbers<[1], [0], [0], [1], [0, 0, 1, 1], [], []>} : vector<128x128xbf16>, vector<128x128xbf16>, vector<128x128xf32> -> vector<128x128xf32>
    %c0_11 = arith.constant 0 : index
    %c0_12 = arith.constant 0 : index
    %13 = vector.load %arg4[%c0_11, %c0_12] : memref<128x128xf32, #tpu.memory_space<vmem>>, vector<128x128xf32>
    tpu.vector_store %arg4[%c0_11, %c0_12], %12 {strides = array<i32>} : memref<128x128xf32, #tpu.memory_space<vmem>>, vector<128x128xf32>,
    return
  }
}

</mosaic_0001>

<llo_original>
// kernel: tpu_custom_call.1
$region0: #{tpu_custom_call.1}
  #allocation0 [shape = 'u32[]', space=smem, size = 0x4, offset = 0x4, fixed_abs, tag = 'smem constant byte address 0x4 - core index']
  #allocation1 [shape = 'u32[72,128]{1,0:T(1,128)}', space=vmem, size = 0x9000, scoped, tag = 'internal scratch']
  %s0 = inlined_call_operand.hbm [shape: bf16[128,128], index: 0, kind: input, shape index: {}]
  %s1 = inlined_call_operand.hbm [shape: bf16[128,128], index: 1, kind: input, shape index: {}]
  %s2 = inlined_call_operand.hbm [shape: bf16[128,128], index: 2, kind: input, shape index: {}]
  %s3 = inlined_call_operand.hbm [shape: bf16[128,128], index: 3, kind: input, shape index: {}]
  %s4 = inlined_call_operand.hbm [shape: f32[128,128], index: 4, kind: output, shape index: {}]
  %s5 = sld [smem:[#allocation0]]
  $region42: #{tpu_custom_call.1} parent=0
    _
  %s7 = ssub.s32 1, %s5
  %s8 = scalar_select 0, %s7, %s5
  $region1: #{tpu_custom_call.1} parent=0
    #allocation2 [shape = 'u8[32768]{0}', space=vmem, size = 0x8000, scoped, tag = 'input window, operand 0, single buffered']
    #allocation3 [shape = 's32[1]{0}', space=sflag, size = 0x4, scoped, tag = 'scoped memory for tpu_custom_call.1']
    #allocation4 [shape = 's32[1]{0}', space=sflag, size = 0x4, scoped, tag = 'scoped memory for tpu_custom_call.1']
    #allocation5 [shape = 'u8[32768]{0}', space=vmem, size = 0x8000, scoped, tag = 'input window, operand 1, single buffered']
    #allocation6 [shape = 's32[1]{0}', space=sflag, size = 0x4, scoped, tag = 'scoped memory for tpu_custom_call.1']
    #allocation7 [shape = 'u8[32768]{0}', space=vmem, size = 0x8000, scoped, tag = 'input window, operand 2, single buffered']
    #allocation8 [shape = 'u8[32768]{0}', space=vmem, size = 0x8000, scoped, tag = 'input window, operand 3, single buffered']
    #allocation9 [shape = 's32[1]{0}', space=sflag, size = 0x4, scoped, tag = 'scoped memory for tpu_custom_call.1']
    #allocation10 [shape = 'u8[65536]{0}', space=vmem, size = 0x10000, scoped, tag = 'output window, operand 0, single buffered']
    %9 = vsyncpa [#allocation3], 0
    %10 = vsyncpa [#allocation6], 0
    %11 = vsyncpa [#allocation9], 0
    %12 = vsyncpa [#allocation4], 0
    // Predicated region
    $region2: #{tpu_custom_call.1} parent=1 // pred_check
      _
    $region3: #{tpu_custom_call.1} parent=1 // pred_check_branch
      %14 = sbr.rel (0) target = $region5
    $region4: #{tpu_custom_call.1} parent=1 // pred_region
      %16 = vsyncadd [#allocation3], 0
      %s17 = sshll.u32 %s0, 4
      %s18 = int_to_ptr.hbm [resolvable:$true] %s17
      %s19 = sshll.u32 [#allocation2], 4
      %s20 = int_to_ptr.vmem [resolvable:$true] %s19
      %25 = dma.hbm_to_vmem [thread:$0]  %s18, 1024, %s20, [#allocation3], 64, 64, 4
    $region5: #{tpu_custom_call.1} parent=1 // pred_fallthru
      _
    // Predicated region
    $region6: #{tpu_custom_call.1} parent=1 // pred_check
      _
    $region7: #{tpu_custom_call.1} parent=1 // pred_check_branch
      %27 = sbr.rel (0) target = $region9
    $region8: #{tpu_custom_call.1} parent=1 // pred_region
      %29 = vsyncadd [#allocation6], 0
      %s30 = sshll.u32 %s1, 4
      %s31 = int_to_ptr.hbm [resolvable:$true] %s30
      %s32 = sshll.u32 [#allocation5], 4
      %s33 = int_to_ptr.vmem [resolvable:$true] %s32
      %38 = dma.hbm_to_vmem [thread:$0]  %s31, 1024, %s33, [#allocation6], 64, 64, 4
    $region9: #{tpu_custom_call.1} parent=1 // pred_fallthru
      _
    // Predicated region
    $region10: #{tpu_custom_call.1} parent=1 // pred_check
      _
    $region11: #{tpu_custom_call.1} parent=1 // pred_check_branch
      %40 = sbr.rel (0) target = $region13
    $region12: #{tpu_custom_call.1} parent=1 // pred_region
      %42 = vsyncadd [#allocation6], 0
      %s43 = sshll.u32 %s2, 4
      %s44 = int_to_ptr.hbm [resolvable:$true] %s43
      %s45 = sshll.u32 [#allocation7], 4
      %s46 = int_to_ptr.vmem [resolvable:$true] %s45
      %51 = dma.hbm_to_vmem [thread:$0]  %s44, 1024, %s46, [#allocation6], 64, 64, 4
    $region13: #{tpu_custom_call.1} parent=1 // pred_fallthru
      _
    // Predicated region
    $region14: #{tpu_custom_call.1} parent=1 // pred_check
      _
    $region15: #{tpu_custom_call.1} parent=1 // pred_check_branch
      %53 = sbr.rel (0) target = $region17
    $region16: #{tpu_custom_call.1} parent=1 // pred_region
      %55 = vsyncadd [#allocation9], 0
      %s56 = sshll.u32 %s3, 4
      %s57 = int_to_ptr.hbm [resolvable:$true] %s56
      %s58 = sshll.u32 [#allocation8], 4
      %s59 = int_to_ptr.vmem [resolvable:$true] %s58
      %64 = dma.hbm_to_vmem [thread:$0]  %s57, 1024, %s59, [#allocation9], 64, 64, 4
    $region17: #{tpu_custom_call.1} parent=1 // pred_fallthru
      _
    // Predicated region
    $region18: #{tpu_custom_call.1} parent=1 // pred_check
      _
    $region19: #{tpu_custom_call.1} parent=1 // pred_check_branch
      %66 = sbr.rel (0) target = $region21
    $region20: #{tpu_custom_call.1} parent=1 // pred_region
      %68 = dma.done [#allocation3], 1024
    $region21: #{tpu_custom_call.1} parent=1 // pred_fallthru
      _
    // Predicated region
    $region22: #{tpu_custom_call.1} parent=1 // pred_check
      _
    $region23: #{tpu_custom_call.1} parent=1 // pred_check_branch
      %70 = sbr.rel (0) target = $region25
    $region24: #{tpu_custom_call.1} parent=1 // pred_region
      %72 = dma.done [#allocation6], 1024
    $region25: #{tpu_custom_call.1} parent=1 // pred_fallthru
      _
    // Predicated region
    $region26: #{tpu_custom_call.1} parent=1 // pred_check
      _
    $region27: #{tpu_custom_call.1} parent=1 // pred_check_branch
      %74 = sbr.rel (0) target = $region29
    $region28: #{tpu_custom_call.1} parent=1 // pred_region
      %76 = dma.done [#allocation6], 1024
    $region29: #{tpu_custom_call.1} parent=1 // pred_fallthru
      _
    // Predicated region
    $region30: #{tpu_custom_call.1} parent=1 // pred_check
      _
    $region31: #{tpu_custom_call.1} parent=1 // pred_check_branch
      %78 = sbr.rel (0) target = $region33
    $region32: #{tpu_custom_call.1} parent=1 // pred_region
      %80 = dma.done [#allocation9], 1024
    $region33: #{tpu_custom_call.1} parent=1 // pred_fallthru
      _
    %v81 = vld [vmem:[#allocation2] sm:$0xf]
    %v82 = vld [vmem:[#allocation2 + $0x4] sm:$0xf]
    %v83 = vld [vmem:[#allocation2 + $0x8] sm:$0xf]
    %v84 = vld [vmem:[#allocation2 + $0xc] sm:$0xf]
    %v85 = vld [vmem:[#allocation2 + $0x10] sm:$0xf]
    %v86 = vld [vmem:[#allocation2 + $0x14] sm:$0xf]
    %v87 = vld [vmem:[#allocation2 + $0x18] sm:$0xf]
    %v88 = vld [vmem:[#allocation2 + $0x1c] sm:$0xf]
    %v89 = vld [vmem:[#allocation2 + $0x20] sm:$0xf]
    %v90 = vld [vmem:[#allocation2 + $0x24] sm:$0xf]
    %v91 = vld [vmem:[#allocation2 + $0x28] sm:$0xf]
    %v92 = vld [vmem:[#allocation2 + $0x2c] sm:$0xf]
    %v93 = vld [vmem:[#allocation2 + $0x30] sm:$0xf]
    %v94 = vld [vmem:[#allocation2 + $0x34] sm:$0xf]
    %v95 = vld [vmem:[#allocation2 + $0x38] sm:$0xf]
    %v96 = vld [vmem:[#allocation2 + $0x3c] sm:$0xf]
    %v97 = vld [vmem:[#allocation5] sm:$0xf]
    %v98 = vld [vmem:[#allocation5 + $0x4] sm:$0xf]
    %v99 = vld [vmem:[#allocation5 + $0x8] sm:$0xf]
    %v100 = vld [vmem:[#allocation5 + $0xc] sm:$0xf]
    %v101 = vld [vmem:[#allocation5 + $0x10] sm:$0xf]
    %v102 = vld [vmem:[#allocation5 + $0x14] sm:$0xf]
    %v103 = vld [vmem:[#allocation5 + $0x18] sm:$0xf]
    %v104 = vld [vmem:[#allocation5 + $0x1c] sm:$0xf]
    %v105 = vld [vmem:[#allocation5 + $0x20] sm:$0xf]
    %v106 = vld [vmem:[#allocation5 + $0x24] sm:$0xf]
    %v107 = vld [vmem:[#allocation5 + $0x28] sm:$0xf]
    %v108 = vld [vmem:[#allocation5 + $0x2c] sm:$0xf]
    %v109 = vld [vmem:[#allocation5 + $0x30] sm:$0xf]
    %v110 = vld [vmem:[#allocation5 + $0x34] sm:$0xf]
    %v111 = vld [vmem:[#allocation5 + $0x38] sm:$0xf]
    %v112 = vld [vmem:[#allocation5 + $0x3c] sm:$0xf]
    %v129 = vunpack.c.l.b16 %v97
    %v130 = vunpack.c.l.b16 %v98
    %v131 = vunpack.c.l.b16 %v99
    %v132 = vunpack.c.l.b16 %v100
    %v133 = vunpack.c.l.b16 %v101
    %v134 = vunpack.c.l.b16 %v102
    %v135 = vunpack.c.l.b16 %v103
    %v136 = vunpack.c.l.b16 %v104
    %v137 = vunpack.c.l.b16 %v105
    %v138 = vunpack.c.l.b16 %v106
    %v139 = vunpack.c.l.b16 %v107
    %v140 = vunpack.c.l.b16 %v108
    %v141 = vunpack.c.l.b16 %v109
    %v142 = vunpack.c.l.b16 %v110
    %v143 = vunpack.c.l.b16 %v111
    %v144 = vunpack.c.l.b16 %v112
    %v145 = vpack.c.b16 %v130, %v129
    %v146 = vpack.c.b16 %v132, %v131
    %v147 = vpack.c.b16 %v134, %v133
    %v148 = vpack.c.b16 %v136, %v135
    %v149 = vpack.c.b16 %v138, %v137
    %v150 = vpack.c.b16 %v140, %v139
    %v151 = vpack.c.b16 %v142, %v141
    %v152 = vpack.c.b16 %v144, %v143
    %v177 = vunpack.c.l.b16 %v81
    %v178 = vunpack.c.l.b16 %v82
    %v179 = vunpack.c.l.b16 %v83
    %v180 = vunpack.c.l.b16 %v84
    %v181 = vunpack.c.l.b16 %v85
    %v182 = vunpack.c.l.b16 %v86
    %v183 = vunpack.c.l.b16 %v87
    %v184 = vunpack.c.l.b16 %v88
    %v185 = vunpack.c.l.b16 %v89
    %v186 = vunpack.c.l.b16 %v90
    %v187 = vunpack.c.l.b16 %v91
    %v188 = vunpack.c.l.b16 %v92
    %v189 = vunpack.c.l.b16 %v93
    %v190 = vunpack.c.l.b16 %v94
    %v191 = vunpack.c.l.b16 %v95
    %v192 = vunpack.c.l.b16 %v96
    %v193 = vpack.c.b16 %v178, %v177
    %v194 = vpack.c.b16 %v180, %v179
    %v195 = vpack.c.b16 %v182, %v181
    %v196 = vpack.c.b16 %v184, %v183
    %v197 = vpack.c.b16 %v186, %v185
    %v198 = vpack.c.b16 %v188, %v187
    %v199 = vpack.c.b16 %v190, %v189
    %v200 = vpack.c.b16 %v192, %v191
    %209 = vmatpush.bf16.msra.mxu0 %v200
    %210 = vmatpush.bf16.msra.mxu0 %v199
    %211 = vmatpush.bf16.msra.mxu0 %v198
    %212 = vmatpush.bf16.msra.mxu0 %v197
    %213 = vmatpush.bf16.msra.mxu0 %v196
    %214 = vmatpush.bf16.msra.mxu0 %v195
    %215 = vmatpush.bf16.msra.mxu0 %v194
    %216 = vmatpush.bf16.msra.mxu0 %v193
    %217 = vmatmul.bf16.gmra.mxu0 %v145
    %v218 = vpop.f32.mrf.mxu0
    %v219 = vadd.f32 0.0, %v218
    %v220 = vpop.f32.mrf.mxu0
    %v221 = vadd.f32 0.0, %v220
    %222 = vmatmul.bf16.gmra.mxu0 %v146
    %v223 = vpop.f32.mrf.mxu0
    %v224 = vadd.f32 0.0, %v223
    %v225 = vpop.f32.mrf.mxu0
    %v226 = vadd.f32 0.0, %v225
    %227 = vmatmul.bf16.gmra.mxu0 %v147
    %v228 = vpop.f32.mrf.mxu0
    %v229 = vadd.f32 0.0, %v228
    %v230 = vpop.f32.mrf.mxu0
    %v231 = vadd.f32 0.0, %v230
    %232 = vmatmul.bf16.gmra.mxu0 %v148
    %v233 = vpop.f32.mrf.mxu0
    %v234 = vadd.f32 0.0, %v233
    %v235 = vpop.f32.mrf.mxu0
    %v236 = vadd.f32 0.0, %v235
    %237 = vmatmul.bf16.gmra.mxu0 %v149
    %v238 = vpop.f32.mrf.mxu0
    %v239 = vadd.f32 0.0, %v238
    %v240 = vpop.f32.mrf.mxu0
    %v241 = vadd.f32 0.0, %v240
    %242 = vmatmul.bf16.gmra.mxu0 %v150
    %v243 = vpop.f32.mrf.mxu0
    %v244 = vadd.f32 0.0, %v243
    %v245 = vpop.f32.mrf.mxu0
    %v246 = vadd.f32 0.0, %v245
    %247 = vmatmul.bf16.gmra.mxu0 %v151
    %v248 = vpop.f32.mrf.mxu0
    %v249 = vadd.f32 0.0, %v248
    %v250 = vpop.f32.mrf.mxu0
    %v251 = vadd.f32 0.0, %v250
    %252 = vmatmul.bf16.gmra.mxu0 %v152
    %v253 = vpop.f32.mrf.mxu0
    %v254 = vadd.f32 0.0, %v253
    %v255 = vpop.f32.mrf.mxu0
    %v256 = vadd.f32 0.0, %v255
    %257 = vdwg.mxu0
    %v258 = vpack.c.bf16 %v221, %v219
    %v259 = vpack.c.bf16 %v226, %v224
    %v260 = vpack.c.bf16 %v231, %v229
    %v261 = vpack.c.bf16 %v236, %v234
    %v262 = vpack.c.bf16 %v241, %v239
    %v263 = vpack.c.bf16 %v246, %v244
    %v264 = vpack.c.bf16 %v251, %v249
    %v265 = vpack.c.bf16 %v256, %v254
    %v266 = vld [vmem:[#allocation7] sm:$0xf]
    %v267 = vld [vmem:[#allocation7 + $0x4] sm:$0xf]
    %v268 = vld [vmem:[#allocation7 + $0x8] sm:$0xf]
    %v269 = vld [vmem:[#allocation7 + $0xc] sm:$0xf]
    %v270 = vld [vmem:[#allocation7 + $0x10] sm:$0xf]
    %v271 = vld [vmem:[#allocation7 + $0x14] sm:$0xf]
    %v272 = vld [vmem:[#allocation7 + $0x18] sm:$0xf]
    %v273 = vld [vmem:[#allocation7 + $0x1c] sm:$0xf]
    %v274 = vld [vmem:[#allocation7 + $0x20] sm:$0xf]
    %v275 = vld [vmem:[#allocation7 + $0x24] sm:$0xf]
    %v276 = vld [vmem:[#allocation7 + $0x28] sm:$0xf]
    %v277 = vld [vmem:[#allocation7 + $0x2c] sm:$0xf]
    %v278 = vld [vmem:[#allocation7 + $0x30] sm:$0xf]
    %v279 = vld [vmem:[#allocation7 + $0x34] sm:$0xf]
    %v280 = vld [vmem:[#allocation7 + $0x38] sm:$0xf]
    %v281 = vld [vmem:[#allocation7 + $0x3c] sm:$0xf]
    %v298 = vunpack.c.l.b16 %v266
    %v299 = vunpack.c.l.b16 %v267
    %v300 = vunpack.c.l.b16 %v268
    %v301 = vunpack.c.l.b16 %v269
    %v302 = vunpack.c.l.b16 %v270
    %v303 = vunpack.c.l.b16 %v271
    %v304 = vunpack.c.l.b16 %v272
    %v305 = vunpack.c.l.b16 %v273
    %v306 = vunpack.c.l.b16 %v274
    %v307 = vunpack.c.l.b16 %v275
    %v308 = vunpack.c.l.b16 %v276
    %v309 = vunpack.c.l.b16 %v277
    %v310 = vunpack.c.l.b16 %v278
    %v311 = vunpack.c.l.b16 %v279
    %v312 = vunpack.c.l.b16 %v280
    %v313 = vunpack.c.l.b16 %v281
    %v314 = vpack.c.b16 %v299, %v298
    %v315 = vpack.c.b16 %v301, %v300
    %v316 = vpack.c.b16 %v303, %v302
    %v317 = vpack.c.b16 %v305, %v304
    %v318 = vpack.c.b16 %v307, %v306
    %v319 = vpack.c.b16 %v309, %v308
    %v320 = vpack.c.b16 %v311, %v310
    %v321 = vpack.c.b16 %v313, %v312
    %330 = vmatpush.bf16.msra.mxu0 %v321
    %331 = vmatpush.bf16.msra.mxu0 %v320
    %332 = vmatpush.bf16.msra.mxu0 %v319
    %333 = vmatpush.bf16.msra.mxu0 %v318
    %334 = vmatpush.bf16.msra.mxu0 %v317
    %335 = vmatpush.bf16.msra.mxu0 %v316
    %336 = vmatpush.bf16.msra.mxu0 %v315
    %337 = vmatpush.bf16.msra.mxu0 %v314
    %338 = vmatmul.bf16.gmra.mxu0 %v258
    %v339 = vpop.f32.mrf.mxu0
    %v340 = vadd.f32 0.0, %v339
    %v341 = vpop.f32.mrf.mxu0
    %v342 = vadd.f32 0.0, %v341
    %343 = vmatmul.bf16.gmra.mxu0 %v259
    %v344 = vpop.f32.mrf.mxu0
    %v345 = vadd.f32 0.0, %v344
    %v346 = vpop.f32.mrf.mxu0
    %v347 = vadd.f32 0.0, %v346
    %348 = vmatmul.bf16.gmra.mxu0 %v260
    %v349 = vpop.f32.mrf.mxu0
    %v350 = vadd.f32 0.0, %v349
    %v351 = vpop.f32.mrf.mxu0
    %v352 = vadd.f32 0.0, %v351
    %353 = vmatmul.bf16.gmra.mxu0 %v261
    %v354 = vpop.f32.mrf.mxu0
    %v355 = vadd.f32 0.0, %v354
    %v356 = vpop.f32.mrf.mxu0
    %v357 = vadd.f32 0.0, %v356
    %358 = vmatmul.bf16.gmra.mxu0 %v262
    %v359 = vpop.f32.mrf.mxu0
    %v360 = vadd.f32 0.0, %v359
    %v361 = vpop.f32.mrf.mxu0
    %v362 = vadd.f32 0.0, %v361
    %363 = vmatmul.bf16.gmra.mxu0 %v263
    %v364 = vpop.f32.mrf.mxu0
    %v365 = vadd.f32 0.0, %v364
    %v366 = vpop.f32.mrf.mxu0
    %v367 = vadd.f32 0.0, %v366
    %368 = vmatmul.bf16.gmra.mxu0 %v264
    %v369 = vpop.f32.mrf.mxu0
    %v370 = vadd.f32 0.0, %v369
    %v371 = vpop.f32.mrf.mxu0
    %v372 = vadd.f32 0.0, %v371
    %373 = vmatmul.bf16.gmra.mxu0 %v265
    %v374 = vpop.f32.mrf.mxu0
    %v375 = vadd.f32 0.0, %v374
    %v376 = vpop.f32.mrf.mxu0
    %v377 = vadd.f32 0.0, %v376
    %378 = vdwg.mxu0
    %v379 = vmax.f32 %v340, 0.0
    %v380 = vmax.f32 %v342, 0.0
    %v381 = vmax.f32 %v345, 0.0
    %v382 = vmax.f32 %v347, 0.0
    %v383 = vmax.f32 %v350, 0.0
    %v384 = vmax.f32 %v352, 0.0
    %v385 = vmax.f32 %v355, 0.0
    %v386 = vmax.f32 %v357, 0.0
    %v387 = vmax.f32 %v360, 0.0
    %v388 = vmax.f32 %v362, 0.0
    %v389 = vmax.f32 %v365, 0.0
    %v390 = vmax.f32 %v367, 0.0
    %v391 = vmax.f32 %v370, 0.0
    %v392 = vmax.f32 %v372, 0.0
    %v393 = vmax.f32 %v375, 0.0
    %v394 = vmax.f32 %v377, 0.0
    %v395 = vpack.c.bf16 %v380, %v379
    %v396 = vpack.c.bf16 %v382, %v381
    %v397 = vpack.c.bf16 %v384, %v383
    %v398 = vpack.c.bf16 %v386, %v385
    %v399 = vpack.c.bf16 %v388, %v387
    %v400 = vpack.c.bf16 %v390, %v389
    %v401 = vpack.c.bf16 %v392, %v391
    %v402 = vpack.c.bf16 %v394, %v393
    %v403 = vld [vmem:[#allocation8] sm:$0xf]
    %v404 = vld [vmem:[#allocation8 + $0x4] sm:$0xf]
    %v405 = vld [vmem:[#allocation8 + $0x8] sm:$0xf]
    %v406 = vld [vmem:[#allocation8 + $0xc] sm:$0xf]
    %v407 = vld [vmem:[#allocation8 + $0x10] sm:$0xf]
    %v408 = vld [vmem:[#allocation8 + $0x14] sm:$0xf]
    %v409 = vld [vmem:[#allocation8 + $0x18] sm:$0xf]
    %v410 = vld [vmem:[#allocation8 + $0x1c] sm:$0xf]
    %v411 = vld [vmem:[#allocation8 + $0x20] sm:$0xf]
    %v412 = vld [vmem:[#allocation8 + $0x24] sm:$0xf]
    %v413 = vld [vmem:[#allocation8 + $0x28] sm:$0xf]
    %v414 = vld [vmem:[#allocation8 + $0x2c] sm:$0xf]
    %v415 = vld [vmem:[#allocation8 + $0x30] sm:$0xf]
    %v416 = vld [vmem:[#allocation8 + $0x34] sm:$0xf]
    %v417 = vld [vmem:[#allocation8 + $0x38] sm:$0xf]
    %v418 = vld [vmem:[#allocation8 + $0x3c] sm:$0xf]
    %v435 = vunpack.c.l.b16 %v403
    %v436 = vunpack.c.l.b16 %v404
    %v437 = vunpack.c.l.b16 %v405
    %v438 = vunpack.c.l.b16 %v406
    %v439 = vunpack.c.l.b16 %v407
    %v440 = vunpack.c.l.b16 %v408
    %v441 = vunpack.c.l.b16 %v409
    %v442 = vunpack.c.l.b16 %v410
    %v443 = vunpack.c.l.b16 %v411
    %v444 = vunpack.c.l.b16 %v412
    %v445 = vunpack.c.l.b16 %v413
    %v446 = vunpack.c.l.b16 %v414
    %v447 = vunpack.c.l.b16 %v415
    %v448 = vunpack.c.l.b16 %v416
    %v449 = vunpack.c.l.b16 %v417
    %v450 = vunpack.c.l.b16 %v418
    %v451 = vpack.c.b16 %v436, %v435
    %v452 = vpack.c.b16 %v438, %v437
    %v453 = vpack.c.b16 %v440, %v439
    %v454 = vpack.c.b16 %v442, %v441
    %v455 = vpack.c.b16 %v444, %v443
    %v456 = vpack.c.b16 %v446, %v445
    %v457 = vpack.c.b16 %v448, %v447
    %v458 = vpack.c.b16 %v450, %v449
    %467 = vmatpush.bf16.msra.mxu0 %v458
    %468 = vmatpush.bf16.msra.mxu0 %v457
    %469 = vmatpush.bf16.msra.mxu0 %v456
    %470 = vmatpush.bf16.msra.mxu0 %v455
    %471 = vmatpush.bf16.msra.mxu0 %v454
    %472 = vmatpush.bf16.msra.mxu0 %v453
    %473 = vmatpush.bf16.msra.mxu0 %v452
    %474 = vmatpush.bf16.msra.mxu0 %v451
    %475 = vmatmul.bf16.gmra.mxu0 %v395
    %v476 = vpop.f32.mrf.mxu0
    %v477 = vadd.f32 0.0, %v476
    %v478 = vpop.f32.mrf.mxu0
    %v479 = vadd.f32 0.0, %v478
    %480 = vmatmul.bf16.gmra.mxu0 %v396
    %v481 = vpop.f32.mrf.mxu0
    %v482 = vadd.f32 0.0, %v481
    %v483 = vpop.f32.mrf.mxu0
    %v484 = vadd.f32 0.0, %v483
    %485 = vmatmul.bf16.gmra.mxu0 %v397
    %v486 = vpop.f32.mrf.mxu0
    %v487 = vadd.f32 0.0, %v486
    %v488 = vpop.f32.mrf.mxu0
    %v489 = vadd.f32 0.0, %v488
    %490 = vmatmul.bf16.gmra.mxu0 %v398
    %v491 = vpop.f32.mrf.mxu0
    %v492 = vadd.f32 0.0, %v491
    %v493 = vpop.f32.mrf.mxu0
    %v494 = vadd.f32 0.0, %v493
    %495 = vmatmul.bf16.gmra.mxu0 %v399
    %v496 = vpop.f32.mrf.mxu0
    %v497 = vadd.f32 0.0, %v496
    %v498 = vpop.f32.mrf.mxu0
    %v499 = vadd.f32 0.0, %v498
    %500 = vmatmul.bf16.gmra.mxu0 %v400
    %v501 = vpop.f32.mrf.mxu0
    %v502 = vadd.f32 0.0, %v501
    %v503 = vpop.f32.mrf.mxu0
    %v504 = vadd.f32 0.0, %v503
    %505 = vmatmul.bf16.gmra.mxu0 %v401
    %v506 = vpop.f32.mrf.mxu0
    %v507 = vadd.f32 0.0, %v506
    %v508 = vpop.f32.mrf.mxu0
    %v509 = vadd.f32 0.0, %v508
    %510 = vmatmul.bf16.gmra.mxu0 %v402
    %v511 = vpop.f32.mrf.mxu0
    %v512 = vadd.f32 0.0, %v511
    %v513 = vpop.f32.mrf.mxu0
    %v514 = vadd.f32 0.0, %v513
    %515 = vdwg.mxu0
    %v516 = vpack.c.bf16 %v479, %v477
    %v517 = vpack.c.bf16 %v484, %v482
    %v518 = vpack.c.bf16 %v489, %v487
    %v519 = vpack.c.bf16 %v494, %v492
    %v520 = vpack.c.bf16 %v499, %v497
    %v521 = vpack.c.bf16 %v504, %v502
    %v522 = vpack.c.bf16 %v509, %v507
    %v523 = vpack.c.bf16 %v514, %v512
    %524 = vmatpush.bf16.msra.mxu0 %v523
    %525 = vmatpush.bf16.msra.mxu0 %v522
    %526 = vmatpush.bf16.msra.mxu0 %v521
    %527 = vmatpush.bf16.msra.mxu0 %v520
    %528 = vmatpush.bf16.msra.mxu0 %v519
    %529 = vmatpush.bf16.msra.mxu0 %v518
    %530 = vmatpush.bf16.msra.mxu0 %v517
    %531 = vmatpush.bf16.msra.mxu0 %v516
    %532 = vmatmul.bf16.gmra.mxu0 %v145
    %v533 = vpop.f32.mrf.mxu0
    %v534 = vadd.f32 0.0, %v533
    %v535 = vpop.f32.mrf.mxu0
    %v536 = vadd.f32 0.0, %v535
    %537 = vmatmul.bf16.gmra.mxu0 %v146
    %v538 = vpop.f32.mrf.mxu0
    %v539 = vadd.f32 0.0, %v538
    %v540 = vpop.f32.mrf.mxu0
    %v541 = vadd.f32 0.0, %v540
    %542 = vmatmul.bf16.gmra.mxu0 %v147
    %v543 = vpop.f32.mrf.mxu0
    %v544 = vadd.f32 0.0, %v543
    %v545 = vpop.f32.mrf.mxu0
    %v546 = vadd.f32 0.0, %v545
    %547 = vmatmul.bf16.gmra.mxu0 %v148
    %v548 = vpop.f32.mrf.mxu0
    %v549 = vadd.f32 0.0, %v548
    %v550 = vpop.f32.mrf.mxu0
    %v551 = vadd.f32 0.0, %v550
    %552 = vmatmul.bf16.gmra.mxu0 %v149
    %v553 = vpop.f32.mrf.mxu0
    %v554 = vadd.f32 0.0, %v553
    %v555 = vpop.f32.mrf.mxu0
    %v556 = vadd.f32 0.0, %v555
    %557 = vmatmul.bf16.gmra.mxu0 %v150
    %v558 = vpop.f32.mrf.mxu0
    %v559 = vadd.f32 0.0, %v558
    %v560 = vpop.f32.mrf.mxu0
    %v561 = vadd.f32 0.0, %v560
    %562 = vmatmul.bf16.gmra.mxu0 %v151
    %v563 = vpop.f32.mrf.mxu0
    %v564 = vadd.f32 0.0, %v563
    %v565 = vpop.f32.mrf.mxu0
    %v566 = vadd.f32 0.0, %v565
    %567 = vmatmul.bf16.gmra.mxu0 %v152
    %v568 = vpop.f32.mrf.mxu0
    %v569 = vadd.f32 0.0, %v568
    %v570 = vpop.f32.mrf.mxu0
    %v571 = vadd.f32 0.0, %v570
    %572 = vdwg.mxu0
    %573 = vst [vmem:[#allocation10] sm:$0xff] %v534
    %574 = vst [vmem:[#allocation10 + $0x8] sm:$0xff] %v536
    %575 = vst [vmem:[#allocation10 + $0x10] sm:$0xff] %v539
    %576 = vst [vmem:[#allocation10 + $0x18] sm:$0xff] %v541
    %577 = vst [vmem:[#allocation10 + $0x20] sm:$0xff] %v544
    %578 = vst [vmem:[#allocation10 + $0x28] sm:$0xff] %v546
    %579 = vst [vmem:[#allocation10 + $0x30] sm:$0xff] %v549
    %580 = vst [vmem:[#allocation10 + $0x38] sm:$0xff] %v551
    %581 = vst [vmem:[#allocation10 + $0x40] sm:$0xff] %v554
    %582 = vst [vmem:[#allocation10 + $0x48] sm:$0xff] %v556
    %583 = vst [vmem:[#allocation10 + $0x50] sm:$0xff] %v559
    %584 = vst [vmem:[#allocation10 + $0x58] sm:$0xff] %v561
    %585 = vst [vmem:[#allocation10 + $0x60] sm:$0xff] %v564
    %586 = vst [vmem:[#allocation10 + $0x68] sm:$0xff] %v566
    %587 = vst [vmem:[#allocation10 + $0x70] sm:$0xff] %v569
    %588 = vst [vmem:[#allocation10 + $0x78] sm:$0xff] %v571
    // Predicated region
    $region34: #{tpu_custom_call.1} parent=1 // pred_check
      _
    $region35: #{tpu_custom_call.1} parent=1 // pred_check_branch
      %590 = sbr.rel (0) target = $region37
    $region36: #{tpu_custom_call.1} parent=1 // pred_region
      %592 = vsyncadd [#allocation4], 0
      %s593 = sshll.u32 [#allocation10], 4
      %s594 = int_to_ptr.vmem [resolvable:$true] %s593
      %s595 = sshll.u32 %s4, 4
      %s596 = int_to_ptr.hbm [resolvable:$true] %s595
      %601 = dma.vmem_to_hbm [thread:$0]  %s594, 2048, %s596, [#allocation4], 128, 128, 8
    $region37: #{tpu_custom_call.1} parent=1 // pred_fallthru
      _
    // Predicated region
    $region38: #{tpu_custom_call.1} parent=1 // pred_check
      _
    $region39: #{tpu_custom_call.1} parent=1 // pred_check_branch
      %603 = sbr.rel (0) target = $region41
    $region40: #{tpu_custom_call.1} parent=1 // pred_region
      %605 = dma.done [#allocation4], 2048
    $region41: #{tpu_custom_call.1} parent=1 // pred_fallthru
      _
    %606 = vsyncpa [#allocation3], 1
    %607 = vsyncpa [#allocation6], 1
    %608 = vsyncpa [#allocation9], 1
    %609 = vsyncpa [#allocation4], 1

</llo_original>
